<compile_context>
chip_gen: v5e
topology: v5e:2x2
jax: 0.10.0
libtpu: 0.0.40
codegen_flags: <defaults>
</compile_context>

<pallas_src>
import functools

import jax
import jax.numpy as jnp
from jax.experimental import pallas as pl
from jax.experimental.pallas import tpu as pltpu


# ----------------------------------------------------------------------------
# Kernel
# ----------------------------------------------------------------------------
def _contrastive_loss_kernel(n_rows,
                             x_ref, out_ref,
                             col_m_ref, col_s_ref, row_acc_ref, diag_acc_ref):
    """Grid axis 0 walks row tiles of the (N, N) logits matrix.

    Scratch:
      col_m_ref   (1, N)  running column-wise max          (online lse)
      col_s_ref   (1, N)  running column-wise sum of exp   (online lse)
      row_acc_ref (1, 1)  accumulated sum of row logsumexp
      diag_acc_ref(1, 1)  accumulated sum of diagonal logits
    """
    i = pl.program_id(0)
    n_tiles = pl.num_programs(0)
    tr = x_ref.shape[0]

    x = x_ref[...].astype(jnp.float32)                     # (TR, N), f32 math

    @pl.when(i == 0)
    def _init():
        col_m_ref[...] = jnp.full_like(col_m_ref, -jnp.inf)
        col_s_ref[...] = jnp.zeros_like(col_s_ref)
        row_acc_ref[...] = jnp.zeros_like(row_acc_ref)
        diag_acc_ref[...] = jnp.zeros_like(diag_acc_ref)

    # ---- row-wise logsumexp of this tile (image -> text direction) ----
    row_max = jnp.max(x, axis=-1, keepdims=True)           # (TR, 1)
    row_lse = row_max + jnp.log(
        jnp.sum(jnp.exp(x - row_max), axis=-1, keepdims=True))
    row_acc_ref[...] = row_acc_ref[...] + jnp.sum(row_lse)

    # ---- diagonal contribution logits[i, i] of this tile ----
    row_ids = jax.lax.broadcasted_iota(jnp.int32, x.shape, 0) + i * tr
    col_ids = jax.lax.broadcasted_iota(jnp.int32, x.shape, 1)
    diag_acc_ref[...] = diag_acc_ref[...] + jnp.sum(
        jnp.where(row_ids == col_ids, x, 0.0))

    # ---- online column-wise logsumexp (text -> image direction) ----
    tile_col_max = jnp.max(x, axis=0, keepdims=True)        # (1, N)
    m_old = col_m_ref[...]
    m_new = jnp.maximum(m_old, tile_col_max)
    col_s_ref[...] = (col_s_ref[...] * jnp.exp(m_old - m_new)
                      + jnp.sum(jnp.exp(x - m_new), axis=0, keepdims=True))
    col_m_ref[...] = m_new

    # ---- finalize on the last tile ----
    @pl.when(i == n_tiles - 1)
    def _finalize():
        col_lse = col_m_ref[...] + jnp.log(col_s_ref[...])   # (1, N)
        total = (row_acc_ref[...] + jnp.sum(col_lse)
                 - 2.0 * diag_acc_ref[...])                  # (1, 1)
        out_ref[...] = ((0.5 / float(n_rows)) * total).astype(out_ref.dtype)


# ----------------------------------------------------------------------------
# Wrapper
# ----------------------------------------------------------------------------
def _pick_block_rows(n):
    """Largest row tile that evenly divides N, keeps VMEM use modest."""
    if n <= 512:
        return n                      # single tile (block = full array)
    for cand in (512, 256, 128, 64, 32, 16, 8):
        if n % cand == 0:
            return cand
    return n                          # odd N: fall back to one big tile


def contrastive_loss(logits):
    n, n2 = logits.shape
    assert n == n2, "ContrastiveLoss expects a square (N, N) logits matrix"
    tr = _pick_block_rows(n)
    grid = (n // tr,)

    cost = pl.CostEstimate(
        flops=int(8 * n * n),                 # exp/add/mul over the matrix
        transcendentals=int(2 * n * n),       # exp for both lse directions
        bytes_accessed=int(logits.size * logits.dtype.itemsize + 4),
    )

    out = pl.pallas_call(
        functools.partial(_contrastive_loss_kernel, n),
        out_shape=jax.ShapeDtypeStruct((1, 1), jnp.float32),
        grid_spec=pltpu.PrefetchScalarGridSpec(
            num_scalar_prefetch=0,
            grid=grid,
            in_specs=[pl.BlockSpec((tr, n), lambda i: (i, 0))],
            out_specs=pl.BlockSpec((1, 1), lambda i: (0, 0)),
            scratch_shapes=[
                pltpu.VMEM((1, n), jnp.float32),   # running column max
                pltpu.VMEM((1, n), jnp.float32),   # running column sum-exp
                pltpu.VMEM((1, 1), jnp.float32),   # sum of row logsumexp
                pltpu.VMEM((1, 1), jnp.float32),   # sum of diagonal logits
            ],
        ),
        compiler_params=pltpu.CompilerParams(
            dimension_semantics=("arbitrary",),    # sequential accumulation
        ),
        cost_estimate=cost,
    )(logits)
    return out[0, 0]


# ----------------------------------------------------------------------------
if __name__ == "__main__":
    key = jax.random.PRNGKey(0)
    B, E = 8, 32                      # contrastive batch of 8, embed dim 32
    k_img, k_txt = jax.random.split(key)

    # Build CLIP-style logits: normalized image/text features, scaled similarity.
    img = jax.random.normal(k_img, (B, E), jnp.float32)
    txt = jax.random.normal(k_txt, (B, E), jnp.float32)
    img = img / jnp.linalg.norm(img, axis=-1, keepdims=True)
    txt = txt / jnp.linalg.norm(txt, axis=-1, keepdims=True)
    logit_scale = jnp.float32(1.0 / 0.07)
    logits = logit_scale * (img @ txt.T)                 # (B, B)

    loss = contrastive_loss(logits)
    loss = jax.block_until_ready(loss)

    # Pure-JAX reference of the PyTorch module's forward.
    labels = jnp.arange(B)
    def _xent(lg):
        lse = jax.nn.logsumexp(lg, axis=-1)
        return jnp.mean(lse - lg[jnp.arange(lg.shape[0]), labels])
    ref = 0.5 * (_xent(logits) + _xent(logits.T))

    assert loss.shape == ()
    assert jnp.isfinite(loss)
    assert jnp.allclose(loss, ref, rtol=1e-5, atol=1e-5), (float(loss), float(ref))
    print("KERNEL_OK")
</pallas_src>

<mosaic_0001>
module attributes {stable_mosaic.version = 11 : i64} {
  func.func @_contrastive_loss_kernel(%arg0: i32, %arg1: memref<8x8xf32, #tpu.memory_space<vmem>>, %arg2: memref<1x1xf32, #tpu.memory_space<vmem>>, %arg3: memref<1x8xf32, #tpu.memory_space<vmem>>, %arg4: memref<1x8xf32, #tpu.memory_space<vmem>>, %arg5: memref<1x1xf32, #tpu.memory_space<vmem>>, %arg6: memref<1x1xf32, #tpu.memory_space<vmem>>) attributes {dimension_semantics = [#tpu.dimension_semantics<arbitrary>], iteration_bounds = array<i64: 1>, scalar_prefetch = 0 : i64, scratch_operands = 4 : i64, tpu.core_type = #tpu.core_type<tc>, window_params = [{transform_indices = @transform_0, window_bounds = array<i64: 8, 8>}, {pipeline_mode = #tpu.pipeline_mode<synchronous>, transform_indices = @transform_1, window_bounds = array<i64: 1, 1>}]} {
    %c0 = arith.constant 0 : index
    %c0_0 = arith.constant 0 : index
    %0 = vector.load %arg1[%c0, %c0_0] : memref<8x8xf32, #tpu.memory_space<vmem>>, vector<8x8xf32>
    %c0_i32 = arith.constant 0 : i32
    %1 = arith.cmpi eq, %arg0, %c0_i32 : i32
    %2 = arith.extui %1 : i1 to i32
    %c0_i32_1 = arith.constant 0 : i32
    %3 = arith.cmpi ne, %2, %c0_i32_1 : i32
    scf.if %3 {
      %cst_26 = arith.constant 0xFF800000 : f32
      %56 = vector.broadcast %cst_26 : f32 to vector<1x8xf32>
      %c0_27 = arith.constant 0 : index
      %c0_28 = arith.constant 0 : index
      %57 = vector.load %arg3[%c0_27, %c0_28] : memref<1x8xf32, #tpu.memory_space<vmem>>, vector<1x8xf32>
      tpu.vector_store %arg3[%c0_27, %c0_28], %56 {strides = array<i32>} : memref<1x8xf32, #tpu.memory_space<vmem>>, vector<1x8xf32>,
      %cst_29 = arith.constant 0.000000e+00 : f32
      %58 = vector.broadcast %cst_29 : f32 to vector<1x8xf32>
      %c0_30 = arith.constant 0 : index
      %c0_31 = arith.constant 0 : index
      %59 = vector.load %arg4[%c0_30, %c0_31] : memref<1x8xf32, #tpu.memory_space<vmem>>, vector<1x8xf32>
      tpu.vector_store %arg4[%c0_30, %c0_31], %58 {strides = array<i32>} : memref<1x8xf32, #tpu.memory_space<vmem>>, vector<1x8xf32>,
      %cst_32 = arith.constant 0.000000e+00 : f32
      %60 = vector.broadcast %cst_32 : f32 to vector<1x1xf32>
      %c0_33 = arith.constant 0 : index
      %c0_34 = arith.constant 0 : index
      %61 = vector.load %arg5[%c0_33, %c0_34] : memref<1x1xf32, #tpu.memory_space<vmem>>, vector<1x1xf32>
      tpu.vector_store %arg5[%c0_33, %c0_34], %60 {strides = array<i32>} : memref<1x1xf32, #tpu.memory_space<vmem>>, vector<1x1xf32>,
      %cst_35 = arith.constant 0.000000e+00 : f32
      %62 = vector.broadcast %cst_35 : f32 to vector<1x1xf32>
      %c0_36 = arith.constant 0 : index
      %c0_37 = arith.constant 0 : index
      %63 = vector.load %arg6[%c0_36, %c0_37] : memref<1x1xf32, #tpu.memory_space<vmem>>, vector<1x1xf32>
      tpu.vector_store %arg6[%c0_36, %c0_37], %62 {strides = array<i32>} : memref<1x1xf32, #tpu.memory_space<vmem>>, vector<1x1xf32>,
    } else {
    }
    %cst = arith.constant dense<0xFF800000> : vector<8xf32>
    %4 = vector.multi_reduction <maximumf>, %0, %cst [1] : vector<8x8xf32> to vector<8xf32>
    %5 = vector.shape_cast %4 : vector<8xf32> to vector<8x1xf32>
    %6 = vector.broadcast %5 : vector<8x1xf32> to vector<8x8xf32>
    %7 = arith.subf %0, %6 : vector<8x8xf32>
    %8 = math.exp %7 : vector<8x8xf32>
    %cst_2 = arith.constant dense<0.000000e+00> : vector<8xf32>
    %9 = vector.multi_reduction <add>, %8, %cst_2 [1] : vector<8x8xf32> to vector<8xf32>
    %10 = vector.shape_cast %9 : vector<8xf32> to vector<8x1xf32>
    %11 = math.log %10 : vector<8x1xf32>
    %12 = arith.addf %5, %11 : vector<8x1xf32>
    %c0_3 = arith.constant 0 : index
    %c0_4 = arith.constant 0 : index
    %13 = vector.load %arg5[%c0_3, %c0_4] : memref<1x1xf32, #tpu.memory_space<vmem>>, vector<1x1xf32>
    %14 = vector.shape_cast %12 : vector<8x1xf32> to vector<1x8x1xf32>
    %cst_5 = arith.constant dense<0.000000e+00> : vector<1xf32>
    %15 = vector.multi_reduction <add>, %14, %cst_5 [1, 2] : vector<1x8x1xf32> to vector<1xf32>
    %16 = vector.shape_cast %15 : vector<1xf32> to vector<1x1x1xf32>
    %17 = vector.extract %16[0, 0, 0] : f32 from vector<1x1x1xf32>
    %18 = vector.broadcast %17 : f32 to vector<1x1xf32>
    %19 = arith.addf %13, %18 : vector<1x1xf32>
    %c0_6 = arith.constant 0 : index
    %c0_7 = arith.constant 0 : index
    %20 = vector.load %arg5[%c0_6, %c0_7] : memref<1x1xf32, #tpu.memory_space<vmem>>, vector<1x1xf32>
    tpu.vector_store %arg5[%c0_6, %c0_7], %19 {strides = array<i32>} : memref<1x1xf32, #tpu.memory_space<vmem>>, vector<1x1xf32>,
    %21 = tpu.iota {dimensions = array<i32: 0>} : vector<8x8xi32>
    %c8_i32 = arith.constant 8 : i32
    %22 = arith.muli %arg0, %c8_i32 : i32
    %23 = vector.broadcast %22 : i32 to vector<8x8xi32>
    %24 = arith.addi %21, %23 : vector<8x8xi32>
    %25 = tpu.iota {dimensions = array<i32: 1>} : vector<8x8xi32>
    %c0_8 = arith.constant 0 : index
    %c0_9 = arith.constant 0 : index
    %26 = vector.load %arg6[%c0_8, %c0_9] : memref<1x1xf32, #tpu.memory_space<vmem>>, vector<1x1xf32>
    %27 = arith.cmpi eq, %24, %25 : vector<8x8xi32>
    %cst_10 = arith.constant 0.000000e+00 : f32
    %28 = vector.broadcast %cst_10 : f32 to vector<8x8xf32>
    %29 = arith.select %27, %0, %28 : vector<8x8xi1>, vector<8x8xf32>
    %30 = vector.shape_cast %29 : vector<8x8xf32> to vector<1x8x8xf32>
    %cst_11 = arith.constant dense<0.000000e+00> : vector<1xf32>
    %31 = vector.multi_reduction <add>, %30, %cst_11 [1, 2] : vector<1x8x8xf32> to vector<1xf32>
    %32 = vector.shape_cast %31 : vector<1xf32> to vector<1x1x1xf32>
    %33 = vector.extract %32[0, 0, 0] : f32 from vector<1x1x1xf32>
    %34 = vector.broadcast %33 : f32 to vector<1x1xf32>
    %35 = arith.addf %26, %34 : vector<1x1xf32>
    %c0_12 = arith.constant 0 : index
    %c0_13 = arith.constant 0 : index
    %36 = vector.load %arg6[%c0_12, %c0_13] : memref<1x1xf32, #tpu.memory_space<vmem>>, vector<1x1xf32>
    tpu.vector_store %arg6[%c0_12, %c0_13], %35 {strides = array<i32>} : memref<1x1xf32, #tpu.memory_space<vmem>>, vector<1x1xf32>,
    %cst_14 = arith.constant dense<0xFF800000> : vector<8xf32>
    %37 = vector.multi_reduction <maximumf>, %0, %cst_14 [0] : vector<8x8xf32> to vector<8xf32>
    %38 = vector.shape_cast %37 : vector<8xf32> to vector<1x8xf32>
    %c0_15 = arith.constant 0 : index
    %c0_16 = arith.constant 0 : index
    %39 = vector.load %arg3[%c0_15, %c0_16] : memref<1x8xf32, #tpu.memory_space<vmem>>, vector<1x8xf32>
    %40 = arith.maximumf %39, %38 : vector<1x8xf32>
    %c0_17 = arith.constant 0 : index
    %c0_18 = arith.constant 0 : index
    %41 = vector.load %arg4[%c0_17, %c0_18] : memref<1x8xf32, #tpu.memory_space<vmem>>, vector<1x8xf32>
    %42 = arith.subf %39, %40 : vector<1x8xf32>
    %43 = math.exp %42 : vector<1x8xf32>
    %44 = arith.mulf %41, %43 : vector<1x8xf32>
    %45 = vector.broadcast %40 : vector<1x8xf32> to vector<8x8xf32>
    %46 = arith.subf %0, %45 : vector<8x8xf32>
    %47 = math.exp %46 : vector<8x8xf32>
    %cst_19 = arith.constant dense<0.000000e+00> : vector<8xf32>
    %48 = vector.multi_reduction <add>, %47, %cst_19 [0] : vector<8x8xf32> to vector<8xf32>
    %49 = vector.shape_cast %48 : vector<8xf32> to vector<1x8xf32>
    %50 = arith.addf %44, %49 : vector<1x8xf32>
    %c0_20 = arith.constant 0 : index
    %c0_21 = arith.constant 0 : index
    %51 = vector.load %arg4[%c0_20, %c0_21] : memref<1x8xf32, #tpu.memory_space<vmem>>, vector<1x8xf32>
    tpu.vector_store %arg4[%c0_20, %c0_21], %50 {strides = array<i32>} : memref<1x8xf32, #tpu.memory_space<vmem>>, vector<1x8xf32>,
    %c0_22 = arith.constant 0 : index
    %c0_23 = arith.constant 0 : index
    %52 = vector.load %arg3[%c0_22, %c0_23] : memref<1x8xf32, #tpu.memory_space<vmem>>, vector<1x8xf32>
    tpu.vector_store %arg3[%c0_22, %c0_23], %40 {strides = array<i32>} : memref<1x8xf32, #tpu.memory_space<vmem>>, vector<1x8xf32>,
    %c0_i32_24 = arith.constant 0 : i32
    %53 = arith.cmpi eq, %arg0, %c0_i32_24 : i32
    %54 = arith.extui %53 : i1 to i32
    %c0_i32_25 = arith.constant 0 : i32
    %55 = arith.cmpi ne, %54, %c0_i32_25 : i32
    scf.if %55 {
      %c0_26 = arith.constant 0 : index
      %c0_27 = arith.constant 0 : index
      %56 = vector.load %arg3[%c0_26, %c0_27] : memref<1x8xf32, #tpu.memory_space<vmem>>, vector<1x8xf32>
      %c0_28 = arith.constant 0 : index
      %c0_29 = arith.constant 0 : index
      %57 = vector.load %arg4[%c0_28, %c0_29] : memref<1x8xf32, #tpu.memory_space<vmem>>, vector<1x8xf32>
      %58 = math.log %57 : vector<1x8xf32>
      %59 = arith.addf %56, %58 : vector<1x8xf32>
      %c0_30 = arith.constant 0 : index
      %c0_31 = arith.constant 0 : index
      %60 = vector.load %arg5[%c0_30, %c0_31] : memref<1x1xf32, #tpu.memory_space<vmem>>, vector<1x1xf32>
      %61 = vector.shape_cast %59 : vector<1x8xf32> to vector<1x1x8xf32>
      %cst_32 = arith.constant dense<0.000000e+00> : vector<1xf32>
      %62 = vector.multi_reduction <add>, %61, %cst_32 [1, 2] : vector<1x1x8xf32> to vector<1xf32>
      %63 = vector.shape_cast %62 : vector<1xf32> to vector<1x1x1xf32>
      %64 = vector.extract %63[0, 0, 0] : f32 from vector<1x1x1xf32>
      %65 = vector.broadcast %64 : f32 to vector<1x1xf32>
      %66 = arith.addf %60, %65 : vector<1x1xf32>
      %c0_33 = arith.constant 0 : index
      %c0_34 = arith.constant 0 : index
      %67 = vector.load %arg6[%c0_33, %c0_34] : memref<1x1xf32, #tpu.memory_space<vmem>>, vector<1x1xf32>
      %cst_35 = arith.constant 2.000000e+00 : f32
      %68 = vector.broadcast %cst_35 : f32 to vector<1x1xf32>
      %69 = arith.mulf %68, %67 : vector<1x1xf32>
      %70 = arith.subf %66, %69 : vector<1x1xf32>
      %cst_36 = arith.constant 6.250000e-02 : f32
      %71 = vector.broadcast %cst_36 : f32 to vector<1x1xf32>
      %72 = arith.mulf %71, %70 : vector<1x1xf32>
      %c0_37 = arith.constant 0 : index
      %c0_38 = arith.constant 0 : index
      %73 = vector.load %arg2[%c0_37, %c0_38] : memref<1x1xf32, #tpu.memory_space<vmem>>, vector<1x1xf32>
      tpu.vector_store %arg2[%c0_37, %c0_38], %72 {strides = array<i32>} : memref<1x1xf32, #tpu.memory_space<vmem>>, vector<1x1xf32>,
    } else {
    }
    return
  }
  func.func @transform_0(%arg0: i32) -> (i32, i32) {
    %c0_i32 = arith.constant 0 : i32
    %c0_i32_0 = arith.constant 0 : i32
    return %arg0, %c0_i32 : i32, i32
  }
  func.func @transform_1(%arg0: i32) -> (i32, i32) {
    %c0_i32 = arith.constant 0 : i32
    %c0_i32_0 = arith.constant 0 : i32
    %c0_i32_1 = arith.constant 0 : i32
    return %c0_i32, %c0_i32_0 : i32, i32
  }
}

</mosaic_0001>

<llo_original>
// kernel: tpu_custom_call.1
$region0: #{tpu_custom_call.1}
  #allocation0 [shape = 'u32[]', space=smem, size = 0x4, offset = 0x4, fixed_abs, tag = 'smem constant byte address 0x4 - core index']
  #allocation1 [shape = 'u32[72,128]{1,0:T(1,128)}', space=vmem, size = 0x9000, scoped, tag = 'internal scratch']
  #allocation2 [shape = 'f32[1,8]{1,0:T(1,128)}', space=vmem, size = 0x200, scoped, tag = 'scratch operand']
  #allocation3 [shape = 'f32[1,8]{1,0:T(1,128)}', space=vmem, size = 0x200, scoped, tag = 'scratch operand']
  #allocation4 [shape = 'f32[1,1]{1,0:T(1,128)}', space=vmem, size = 0x200, scoped, tag = 'scratch operand']
  #allocation5 [shape = 'f32[1,1]{1,0:T(1,128)}', space=vmem, size = 0x200, scoped, tag = 'scratch operand']
  %s0 = inlined_call_operand.hbm [shape: f32[8,8], index: 0, kind: input, shape index: {}]
  %s1 = inlined_call_operand.hbm [shape: f32[1,1], index: 1, kind: output, shape index: {}]
  %s2 = sld [smem:[#allocation0]]
  $region26: #{tpu_custom_call.1} parent=0
    _
  %s4 = ssub.s32 1, %s2
  %s5 = scalar_select 0, %s4, %s2
  $region1: #{tpu_custom_call.1} parent=0
    #allocation6 [shape = 'u8[4096]{0}', space=vmem, size = 0x1000, scoped, tag = 'input window, operand 0, single buffered']
    #allocation7 [shape = 's32[1]{0}', space=sflag, size = 0x4, scoped, tag = 'scoped memory for tpu_custom_call.1']
    #allocation8 [shape = 's32[1]{0}', space=sflag, size = 0x4, scoped, tag = 'scoped memory for tpu_custom_call.1']
    #allocation9 [shape = 'u8[512]{0}', space=vmem, size = 0x400, scoped, tag = 'output window, operand 0, single buffered']
    %6 = vsyncpa [#allocation7], 0
    %7 = vsyncpa [#allocation8], 0
    // Predicated region
    $region2: #{tpu_custom_call.1} parent=1 // pred_check
      _
    $region3: #{tpu_custom_call.1} parent=1 // pred_check_branch
      %9 = sbr.rel (0) target = $region5
    $region4: #{tpu_custom_call.1} parent=1 // pred_region
      %11 = vsyncadd [#allocation7], 0
      %s13 = sshll.u32 %s0, 4
      %s14 = int_to_ptr.hbm [resolvable:$true] %s13
      %s15 = sshll.u32 [#allocation6], 4
      %s16 = int_to_ptr.vmem [resolvable:$true] %s15
      %18 = dma.hbm_to_vmem [thread:$0]  %s14, 128, %s16, [#allocation7]
    $region5: #{tpu_custom_call.1} parent=1 // pred_fallthru
      _
    // Predicated region
    $region6: #{tpu_custom_call.1} parent=1 // pred_check
      _
    $region7: #{tpu_custom_call.1} parent=1 // pred_check_branch
      %20 = sbr.rel (0) target = $region9
    $region8: #{tpu_custom_call.1} parent=1 // pred_region
      %22 = dma.done [#allocation7], 128
    $region9: #{tpu_custom_call.1} parent=1 // pred_fallthru
      _
    %v23 = vld [vmem:[#allocation6] sm:$0xff]
    %p24 = scmp.eq.s32.totalorder 0, 0
    // Predicated region
    $region10: #{tpu_custom_call.1} parent=1 // pred_check
      %p25 = pneg %p24
    $region11: #{tpu_custom_call.1} parent=1 // pred_check_branch
      %27 = sbr.rel (%p25) target = $region13
    $region12: #{tpu_custom_call.1} parent=1 // pred_region
      %vm28 = vcmask 57344
      %29 = vst.msk [vmem:[#allocation2] sm:$0x1] %vm28, -inf
      %30 = vst.msk [vmem:[#allocation3] sm:$0x1] %vm28, 0.0
      %vm31 = vcmask 0
      %32 = vst.msk [vmem:[#allocation4] sm:$0x1] %vm31, 0.0
      %33 = vst.msk [vmem:[#allocation5] sm:$0x1] %vm31, 0.0
    $region13: #{tpu_custom_call.1} parent=1 // pred_fallthru
      _
    %vm34 = vcmask 64512
    %v35 = vsel %vm34, %v23, -inf
    %36 = vmax.xlane.f32.xlu0 %v35
    %v37 = vpop.xlane.xlu0 %36
    %v38 = vsub.f32 %v23, %v37
    %v39 = vmul.f32 %v38, 1.442695
    %v40 = vpow.pop %v39
    %v41 = vsel %vm34, %v40, 0.0
    %42 = vadd.xlane.f32.xlu0 %v41
    %v43 = vpop.xlane.xlu0 %42
    %v44 = vlog2.pop %v43
    %v45 = vmul.f32 %v44, 0.6931472
    %v46 = vadd.f32 %v37, %v45
    %v47 = vld [vmem:[#allocation4] sm:$0x1]
    %vm48 = vcmask 7168
    %v49 = vsel %vm48, %v46, 0.0
    %50 = vadd.xlane.f32.xlu0 %v49
    %v51 = vpop.xlane.xlu0 %50
    %v52 = vrot.slane %v51, 4
    %v53 = vadd.f32 %v51, %v52
    %v54 = vrot.slane %v53, 2
    %v55 = vadd.f32 %v53, %v54
    %v56 = vrot.slane %v55, 1
    %v57 = vadd.f32 %v55, %v56
    %s58 = vtos %v57
    %v59 = vstv %s58
    %v60 = vadd.f32 %v47, %v59
    %vm61 = vcmask 0
    %62 = vst.msk [vmem:[#allocation4] sm:$0x1] %vm61, %v60
    %v63 = vlaneseq
    %v64 = vshrl.u32 %v63, 7
    %s65 = smul.u32 0, 8
    %v66 = vstv %s65
    %v67 = vadd.s32 %v64, %v66
    %v68 = vlaneseq
    %v69 = vand.u32 %v68, 127
    %v70 = vld [vmem:[#allocation5] sm:$0x1]
    %vm71 = vcmp.eq.s32.totalorder %v67, %v69
    %v72 = vsel %vm71, %v23, 0.0
    %v73 = vsel %vm34, %v72, 0.0
    %74 = vadd.xlane.f32.xlu0 %v73
    %v75 = vpop.xlane.xlu0 %74
    %v76 = vrot.slane %v75, 4
    %v77 = vadd.f32 %v75, %v76
    %v78 = vrot.slane %v77, 2
    %v79 = vadd.f32 %v77, %v78
    %v80 = vrot.slane %v79, 1
    %v81 = vadd.f32 %v79, %v80
    %s82 = vtos %v81
    %v83 = vstv %s82
    %v84 = vadd.f32 %v70, %v83
    %85 = vst.msk [vmem:[#allocation5] sm:$0x1] %vm61, %v84
    %v86 = vrot.slane %v35, 4
    %v87 = vmax.f32 %v35, %v86
    %v88 = vrot.slane %v87, 2
    %v89 = vmax.f32 %v87, %v88
    %v90 = vrot.slane %v89, 1
    %v91 = vmax.f32 %v89, %v90
    %v92 = vld [vmem:[#allocation2] sm:$0x1]
    %v93 = vmax.f32 %v92, %v91
    %v94 = vld [vmem:[#allocation3] sm:$0x1]
    %v95 = vsub.f32 %v92, %v93
    %v96 = vmul.f32 %v95, 1.442695
    %v97 = vpow.pop %v96
    %v98 = vmul.f32 %v94, %v97
    %v100 = vperm.slane %v93, 0
    %v102 = vsub.f32 %v23, %v100
    %v103 = vmul.f32 %v102, 1.442695
    %v104 = vpow.pop %v103
    %v105 = vsel %vm34, %v104, 0.0
    %v106 = vrot.slane %v105, 4
    %v107 = vadd.f32 %v105, %v106
    %v108 = vrot.slane %v107, 2
    %v109 = vadd.f32 %v107, %v108
    %v110 = vrot.slane %v109, 1
    %v111 = vadd.f32 %v109, %v110
    %v112 = vadd.f32 %v98, %v111
    %vm113 = vcmask 57344
    %114 = vst.msk [vmem:[#allocation3] sm:$0x1] %vm113, %v112
    %115 = vst.msk [vmem:[#allocation2] sm:$0x1] %vm113, %v93
    // Predicated region
    $region14: #{tpu_custom_call.1} parent=1 // pred_check
      %p116 = pneg %p24
    $region15: #{tpu_custom_call.1} parent=1 // pred_check_branch
      %118 = sbr.rel (%p116) target = $region17
    $region16: #{tpu_custom_call.1} parent=1 // pred_region
      %v119 = vld [vmem:[#allocation2] sm:$0x1]
      %v120 = vld [vmem:[#allocation3] sm:$0x1]
      %v121 = vlog2.pop %v120
      %v122 = vmul.f32 %v121, 0.6931472
      %v123 = vadd.f32 %v119, %v122
      %v124 = vld [vmem:[#allocation4] sm:$0x1]
      %v125 = vsel %vm113, %v123, 0.0
      %126 = vadd.xlane.f32.xlu0 %v125
      %v127 = vpop.xlane.xlu0 %126
      %v128 = vrot.slane %v127, 4
      %v129 = vadd.f32 %v127, %v128
      %v130 = vrot.slane %v129, 2
      %v131 = vadd.f32 %v129, %v130
      %v132 = vrot.slane %v131, 1
      %v133 = vadd.f32 %v131, %v132
      %s134 = vtos %v133
      %v135 = vstv %s134
      %v136 = vadd.f32 %v124, %v135
      %v137 = vld [vmem:[#allocation5] sm:$0x1]
      %v138 = vmul.f32 %v137, 2.0
      %v139 = vsub.f32 %v136, %v138
      %v140 = vmul.f32 %v139, 0.0625
      %141 = vst.msk [vmem:[#allocation9] sm:$0x1] %vm61, %v140
    $region17: #{tpu_custom_call.1} parent=1 // pred_fallthru
      _
    // Predicated region
    $region18: #{tpu_custom_call.1} parent=1 // pred_check
      _
    $region19: #{tpu_custom_call.1} parent=1 // pred_check_branch
      %143 = sbr.rel (0) target = $region21
    $region20: #{tpu_custom_call.1} parent=1 // pred_region
      %145 = vsyncadd [#allocation8], 0
      %s147 = sshll.u32 [#allocation9], 4
      %s148 = int_to_ptr.vmem [resolvable:$true] %s147
      %s149 = sshll.u32 %s1, 4
      %s150 = int_to_ptr.hbm [resolvable:$true] %s149
      %152 = dma.vmem_to_hbm [thread:$0]  %s148, 16, %s150, [#allocation8]
    $region21: #{tpu_custom_call.1} parent=1 // pred_fallthru
      _
    // Predicated region
    $region22: #{tpu_custom_call.1} parent=1 // pred_check
      _
    $region23: #{tpu_custom_call.1} parent=1 // pred_check_branch
      %154 = sbr.rel (0) target = $region25
    $region24: #{tpu_custom_call.1} parent=1 // pred_region
      %156 = dma.done [#allocation8], 16
    $region25: #{tpu_custom_call.1} parent=1 // pred_fallthru
      _
    %157 = vsyncpa [#allocation7], 1
    %158 = vsyncpa [#allocation8], 1

</llo_original>
